<compile_context>
chip_gen: v6e
topology: v6e:2x2x1
jax: 0.10.0
libtpu: 0.0.40
codegen_flags: <defaults>
</compile_context>

<pallas_src>
import functools

import jax
import jax.numpy as jnp
from jax.experimental import pallas as pl
from jax.experimental.pallas import tpu as pltpu


_LANE = 128              # vreg lane width (last-dim tiling unit)
_SUBLANE = 8             # f32 sublane row multiple
_TARGET_STEP_X_BYTES = 2 * 1024 * 1024   # ~2 MiB of x per grid step
_FALLBACK_VMEM_CAP = 64 * 1024 * 1024    # conservative (v7x physical per TC)


def _round_up(a: int, m: int) -> int:
    return ((a + m - 1) // m) * m


def _sublane_multiple(dtype) -> int:
    # f32/int32 -> 8, bf16/int16 -> 16, int8 -> 32 rows per packed sublane group.
    return max(_SUBLANE, 32 // jnp.dtype(dtype).itemsize)


def _padded_tile_bytes(rows: int, cols: int, dtype) -> int:
    item = jnp.dtype(dtype).itemsize
    return _round_up(rows, _sublane_multiple(dtype)) * _round_up(cols, _LANE) * item


def _vmem_capacity_bytes() -> int:
    try:
        cap = getattr(pltpu.get_tpu_info(), "vmem_capacity_bytes", None)
        if cap:
            return int(cap)
    except Exception:
        pass
    return _FALLBACK_VMEM_CAP


def _num_tensorcores() -> int:
    try:
        return max(1, int(getattr(jax.devices()[0], "num_cores", 1)))
    except Exception:
        return 1


# ---------------------------------------------------------------------------
# Kernels
# ---------------------------------------------------------------------------
def _mh_emb_resident_kernel(x_ref, w_ref, o_ref, *, pack, m, e):
    """Whole multi-hot axis resident.

    pack == 1 : x (rows, M)      -> o (rows, E)
    pack  > 1 : x (rows, pack*M) -> o (rows, pack*E == 128); row r of the output
                packs `pack` consecutive batch rows side by side (lane-dense).
    """
    w = w_ref[...]                              # (M, E) f32
    xf = x_ref[...].astype(jnp.float32)         # in-kernel cast (int8/int32/... -> f32)
    if pack == 1:
        o_ref[...] = jnp.dot(xf, w, preferred_element_type=jnp.float32)
    else:
        for j in range(pack):                   # static unrolled; static lane slices
            o_ref[:, j * e:(j + 1) * e] = jnp.dot(
                xf[:, j * m:(j + 1) * m], w, preferred_element_type=jnp.float32)


def _mh_emb_ktiled_kernel(x_ref, w_ref, o_ref, *, m_total, block_k):
    """K-tiled variant for large multi-hot vocabularies.

    Accumulates directly into the (resident-across-k) output block; the ragged
    final K tile is masked in-kernel, so the wrapper never pads/copies x.
    """
    k = pl.program_id(1)

    @pl.when(k == 0)
    def _():
        o_ref[...] = jnp.zeros_like(o_ref)

    xf = x_ref[...].astype(jnp.float32)
    w = w_ref[...]
    if m_total % block_k != 0:
        # Zero the out-of-range tail of the last K tile (stale block padding).
        base = k * block_k
        col = jax.lax.broadcasted_iota(jnp.int32, xf.shape, 1)
        xf = jnp.where(base + col < m_total, xf, 0.0)
        row = jax.lax.broadcasted_iota(jnp.int32, w.shape, 0)
        w = jnp.where(base + row < m_total, w, 0.0)

    o_ref[...] += jnp.dot(xf, w, preferred_element_type=jnp.float32)


# ---------------------------------------------------------------------------
# Tiling heuristics
# ---------------------------------------------------------------------------
def _choose_block_rows(total_rows, *, row_mult, per_row_vmem, fixed_vmem,
                       vmem_budget, x_row_bytes, num_cores):
    """Rows per grid step: multiple of `row_mult` (or the full extent), sized to
    ~2 MiB of x per step, capped by the padded VMEM budget, and split so every
    TensorCore gets >= 2 steps when the device has >1 core and rows allow it."""
    if total_rows <= row_mult:
        return total_rows
    budget = max(vmem_budget - fixed_vmem, row_mult * per_row_vmem)
    vmem_rows = max(row_mult, (budget // max(per_row_vmem, 1)) // row_mult * row_mult)
    tgt_rows = max(row_mult,
                   _round_up(_TARGET_STEP_X_BYTES // max(x_row_bytes, 1), row_mult))
    bb = min(vmem_rows, tgt_rows)
    if num_cores > 1:
        min_steps = 2 * num_cores               # >=2 steps/core: overlap on every core
        if total_rows >= min_steps * row_mult:
            bb = min(bb, _round_up(pl.cdiv(total_rows, min_steps), row_mult))
    if bb >= total_rows:
        return total_rows
    return max(row_mult, bb)


# ---------------------------------------------------------------------------
# pallas_call builders
# ---------------------------------------------------------------------------
def _call_resident(x2d, emb_w, *, block_rows, pack, vmem_limit_bytes, cost,
                   single_buffer_weight):
    R, C = x2d.shape                    # R = B // pack, C = pack * M
    M, E = emb_w.shape
    out_cols = pack * E
    kernel = functools.partial(_mh_emb_resident_kernel, pack=pack, m=M, e=E)
    w_kwargs = dict(pipeline_mode=pl.Buffered(1)) if single_buffer_weight else {}
    return pl.pallas_call(
        kernel,
        out_shape=jax.ShapeDtypeStruct((R, out_cols), jnp.float32),
        grid_spec=pltpu.PrefetchScalarGridSpec(
            num_scalar_prefetch=0,
            grid=(pl.cdiv(R, block_rows),),
            in_specs=[
                pl.BlockSpec((block_rows, C), lambda i: (i, 0)),
                # Constant index_map: weight fetched once; single-buffered when
                # supported to halve its VMEM footprint.
                pl.BlockSpec((M, E), lambda i: (0, 0), **w_kwargs),
            ],
            out_specs=pl.BlockSpec((block_rows, out_cols), lambda i: (i, 0)),
        ),
        compiler_params=pltpu.CompilerParams(
            dimension_semantics=("parallel",),
            vmem_limit_bytes=vmem_limit_bytes,
        ),
        cost_estimate=cost,
    )(x2d, emb_w)


def _call_ktiled(x, emb_w, *, block_b, block_k, vmem_limit_bytes, cost):
    B, M = x.shape
    _, E = emb_w.shape
    kernel = functools.partial(_mh_emb_ktiled_kernel, m_total=M, block_k=block_k)
    return pl.pallas_call(
        kernel,
        out_shape=jax.ShapeDtypeStruct((B, E), jnp.float32),
        grid_spec=pltpu.PrefetchScalarGridSpec(
            num_scalar_prefetch=0,
            grid=(pl.cdiv(B, block_b), pl.cdiv(M, block_k)),   # reduction axis last
            in_specs=[
                pl.BlockSpec((block_b, block_k), lambda i, k: (i, k)),
                pl.BlockSpec((block_k, E), lambda i, k: (k, 0)),
            ],
            out_specs=pl.BlockSpec((block_b, E), lambda i, k: (i, 0)),
        ),
        compiler_params=pltpu.CompilerParams(
            dimension_semantics=("parallel", "arbitrary"),
            vmem_limit_bytes=vmem_limit_bytes,
        ),
        cost_estimate=cost,
    )(x, emb_w)


# ---------------------------------------------------------------------------
# Public wrapper
# ---------------------------------------------------------------------------
def multihot_embedding(x, emb_w, *, block_b=None, block_k=None,
                       vmem_limit_bytes=None):
    """x: (B, M) multi-hot indicators (int8 recommended), emb_w: (M, E) f32.
    Returns (B, 1, E) f32, identical to torch: matmul(x, emb_w).reshape(-1,1,E)."""
    assert x.ndim == 2 and emb_w.ndim == 2
    B, M = x.shape
    M2, E = emb_w.shape
    assert M == M2, (M, M2)

    # NOTE: x is passed straight through -- no wrapper-side dtype-conversion pass
    # over HBM.  The indicator -> f32 cast happens inside the kernel body.
    emb_w = emb_w.astype(jnp.float32)
    x_item = jnp.dtype(x.dtype).itemsize

    vmem_cap = _vmem_capacity_bytes()
    vmem_budget = vmem_cap // 2                       # working-set budget
    if vmem_limit_bytes is None:
        vmem_limit_bytes = (vmem_cap * 3) // 4        # scoped limit with headroom
    num_cores = _num_tensorcores()
    row_mult = max(_sublane_multiple(x.dtype), _SUBLANE)

    cost = pl.CostEstimate(
        flops=2 * B * M * E,
        transcendentals=0,
        bytes_accessed=B * M * x_item + M * E * 4 + B * E * 4,
    )

    # ---- reduction (multi-hot) axis tiling ----------------------------------
    if block_k is None:
        if 2 * _padded_tile_bytes(M, E, jnp.float32) <= vmem_budget // 2:
            block_k = M                                # whole weight resident
        else:
            rows = (vmem_budget // 4) // max(2 * _round_up(E, _LANE) * 4, 1)
            block_k = max(_LANE, (rows // _LANE) * _LANE)
    block_k = min(block_k, M)
    k_tiled = block_k < M
    if k_tiled:
        assert block_k % _LANE == 0, "block_k must be a multiple of 128 when < M"

    if not k_tiled:
        # ---- lane-dense packing: `pack` batch rows per 128-lane output row ----
        pack = 1
        if E % _LANE != 0 and _LANE % E == 0 and B % (_LANE // E) == 0:
            pack = _LANE // E
        x_call = x.reshape(B // pack, pack * M) if pack > 1 else x   # metadata-only
        rows_total, cols_x = x_call.shape
        out_cols = pack * E

        per_row = (2 * _round_up(cols_x, _LANE) * x_item          # x, double-buffered
                   + 2 * _round_up(out_cols, _LANE) * 4)          # out, double-buffered
        fixed = 2 * _padded_tile_bytes(M, E, jnp.float32)         # weight (conservative)
        if block_b is not None:
            br = max(1, block_b // pack)
            block_rows = rows_total if br >= rows_total else \
                min(rows_total, max(row_mult, (br // row_mult) * row_mult))
        else:
            block_rows = _choose_block_rows(
                rows_total, row_mult=row_mult, per_row_vmem=per_row,
                fixed_vmem=fixed, vmem_budget=vmem_budget,
                x_row_bytes=cols_x * x_item, num_cores=num_cores)

        try:
            out2d = _call_resident(x_call, emb_w, block_rows=block_rows, pack=pack,
                                   vmem_limit_bytes=vmem_limit_bytes, cost=cost,
                                   single_buffer_weight=True)
        except Exception:  # pragma: no cover
            # Eager-call fallback only (under jit, lowering errors would escape).
            out2d = _call_resident(x_call, emb_w, block_rows=block_rows, pack=pack,
                                   vmem_limit_bytes=vmem_limit_bytes, cost=cost,
                                   single_buffer_weight=False)
    else:
        # ---- K-tiled accumulate-into-output path (huge vocabularies) ----------
        per_row = (2 * _round_up(block_k, _LANE) * x_item
                   + 2 * _round_up(E, _LANE) * 4)
        fixed = 2 * _padded_tile_bytes(block_k, E, jnp.float32)
        if block_b is not None:
            bb = B if block_b >= B else \
                min(B, max(row_mult, (block_b // row_mult) * row_mult))
        else:
            bb = _choose_block_rows(
                B, row_mult=row_mult, per_row_vmem=per_row, fixed_vmem=fixed,
                vmem_budget=vmem_budget, x_row_bytes=block_k * x_item,
                num_cores=num_cores)
        out2d = _call_ktiled(x, emb_w, block_b=bb, block_k=block_k,
                             vmem_limit_bytes=vmem_limit_bytes, cost=cost)

    # Metadata-only glue: same as torch's .reshape(-1, 1, embed_dim).
    return out2d.reshape(-1, 1, E)


def xavier_uniform(key, shape, dtype=jnp.float32):
    fan_in, fan_out = shape
    bound = jnp.sqrt(6.0 / (fan_in + fan_out)).astype(dtype)
    return jax.random.uniform(key, shape, dtype=dtype, minval=-bound, maxval=bound)


if __name__ == "__main__":
    key = jax.random.PRNGKey(0)
    k_w1, k_x1, k_w2, k_x2 = jax.random.split(key, 4)

    # --- small configuration (resident weight + lane-dense packed output) ----
    batch, multi_hot, embed_dim = 8, 32, 32
    emb_w = xavier_uniform(k_w1, (multi_hot, embed_dim))
    # 0/1 indicators shipped as int8: 1 B/elem of HBM traffic into the kernel.
    x = jax.random.bernoulli(k_x1, p=0.3, shape=(batch, multi_hot)).astype(jnp.int8)

    out = jax.block_until_ready(multihot_embedding(x, emb_w))
    ref = (x.astype(jnp.float32) @ emb_w).reshape(-1, 1, embed_dim)
    assert out.shape == (batch, 1, embed_dim), out.shape
    assert jnp.allclose(out, ref, atol=1e-5, rtol=1e-5)

    # --- larger configuration forcing the K-tiled path (ragged K tail masked) -
    batch2, multi_hot2, embed_dim2 = 64, 320, 32
    emb_w2 = xavier_uniform(k_w2, (multi_hot2, embed_dim2))
    x2 = jax.random.bernoulli(k_x2, p=0.1, shape=(batch2, multi_hot2)).astype(jnp.int8)

    out2 = jax.block_until_ready(multihot_embedding(x2, emb_w2, block_k=128))
    ref2 = (x2.astype(jnp.float32) @ emb_w2).reshape(-1, 1, embed_dim2)
    assert out2.shape == (batch2, 1, embed_dim2), out2.shape
    assert jnp.allclose(out2, ref2, atol=1e-4, rtol=1e-4)

    print("KERNEL_OK")
</pallas_src>

<mosaic_0001>
module attributes {stable_mosaic.version = 11 : i64} {
  func.func @_mh_emb_resident_kernel(%arg0: i32, %arg1: memref<2x128xi8, #tpu.memory_space<vmem>>, %arg2: memref<32x32xf32, #tpu.memory_space<vmem>>, %arg3: memref<2x128xf32, #tpu.memory_space<vmem>>) attributes {dimension_semantics = [#tpu.dimension_semantics<parallel>], iteration_bounds = array<i64: 1>, scalar_prefetch = 0 : i64, scratch_operands = 0 : i64, tpu.core_type = #tpu.core_type<tc>, window_params = [{transform_indices = @transform_0, window_bounds = array<i64: 2, 128>}, {pipeline_mode = #tpu.pipeline_mode<synchronous>, transform_indices = @transform_1, window_bounds = array<i64: 32, 32>}, {transform_indices = @transform_2, window_bounds = array<i64: 2, 128>}]} {
    %c0 = arith.constant 0 : index
    %c0_0 = arith.constant 0 : index
    %0 = vector.load %arg2[%c0, %c0_0] : memref<32x32xf32, #tpu.memory_space<vmem>>, vector<32x32xf32>
    %c0_1 = arith.constant 0 : index
    %c0_2 = arith.constant 0 : index
    %1 = vector.load %arg1[%c0_1, %c0_2] : memref<2x128xi8, #tpu.memory_space<vmem>>, vector<2x128xi8>
    %2 = arith.sitofp %1 : vector<2x128xi8> to vector<2x128xf32>
    %3 = vector.extract_strided_slice %2 {offsets = [0, 0], sizes = [2, 32], strides = [1, 1]} : vector<2x128xf32> to vector<2x32xf32>
    %cst = arith.constant dense<0.000000e+00> : vector<2x32xf32>
    %4 = tpu.matmul %3, %0, %cst {dimension_numbers = #tpu.dot_dimension_numbers<[1], [0], [0], [1], [0, 0, 1, 1], [], []>} : vector<2x32xf32>, vector<32x32xf32>, vector<2x32xf32> -> vector<2x32xf32>
    %c0_3 = arith.constant 0 : index
    %c0_4 = arith.constant 0 : index
    %5 = vector.load %arg3[%c0_3, %c0_4] : memref<2x128xf32, #tpu.memory_space<vmem>>, vector<2x32xf32>
    tpu.vector_store %arg3[%c0_3, %c0_4], %4 {strides = array<i32>} : memref<2x128xf32, #tpu.memory_space<vmem>>, vector<2x32xf32>,
    %6 = vector.extract_strided_slice %2 {offsets = [0, 32], sizes = [2, 32], strides = [1, 1]} : vector<2x128xf32> to vector<2x32xf32>
    %cst_5 = arith.constant dense<0.000000e+00> : vector<2x32xf32>
    %7 = tpu.matmul %6, %0, %cst_5 {dimension_numbers = #tpu.dot_dimension_numbers<[1], [0], [0], [1], [0, 0, 1, 1], [], []>} : vector<2x32xf32>, vector<32x32xf32>, vector<2x32xf32> -> vector<2x32xf32>
    %c0_6 = arith.constant 0 : index
    %c32 = arith.constant 32 : index
    %8 = vector.load %arg3[%c0_6, %c32] : memref<2x128xf32, #tpu.memory_space<vmem>>, vector<2x32xf32>
    tpu.vector_store %arg3[%c0_6, %c32], %7 {strides = array<i32>} : memref<2x128xf32, #tpu.memory_space<vmem>>, vector<2x32xf32>,
    %9 = vector.extract_strided_slice %2 {offsets = [0, 64], sizes = [2, 32], strides = [1, 1]} : vector<2x128xf32> to vector<2x32xf32>
    %cst_7 = arith.constant dense<0.000000e+00> : vector<2x32xf32>
    %10 = tpu.matmul %9, %0, %cst_7 {dimension_numbers = #tpu.dot_dimension_numbers<[1], [0], [0], [1], [0, 0, 1, 1], [], []>} : vector<2x32xf32>, vector<32x32xf32>, vector<2x32xf32> -> vector<2x32xf32>
    %c0_8 = arith.constant 0 : index
    %c64 = arith.constant 64 : index
    %11 = vector.load %arg3[%c0_8, %c64] : memref<2x128xf32, #tpu.memory_space<vmem>>, vector<2x32xf32>
    tpu.vector_store %arg3[%c0_8, %c64], %10 {strides = array<i32>} : memref<2x128xf32, #tpu.memory_space<vmem>>, vector<2x32xf32>,
    %12 = vector.extract_strided_slice %2 {offsets = [0, 96], sizes = [2, 32], strides = [1, 1]} : vector<2x128xf32> to vector<2x32xf32>
    %cst_9 = arith.constant dense<0.000000e+00> : vector<2x32xf32>
    %13 = tpu.matmul %12, %0, %cst_9 {dimension_numbers = #tpu.dot_dimension_numbers<[1], [0], [0], [1], [0, 0, 1, 1], [], []>} : vector<2x32xf32>, vector<32x32xf32>, vector<2x32xf32> -> vector<2x32xf32>
    %c0_10 = arith.constant 0 : index
    %c96 = arith.constant 96 : index
    %14 = vector.load %arg3[%c0_10, %c96] : memref<2x128xf32, #tpu.memory_space<vmem>>, vector<2x32xf32>
    tpu.vector_store %arg3[%c0_10, %c96], %13 {strides = array<i32>} : memref<2x128xf32, #tpu.memory_space<vmem>>, vector<2x32xf32>,
    return
  }
  func.func @transform_0(%arg0: i32) -> (i32, i32) {
    %c0_i32 = arith.constant 0 : i32
    %c0_i32_0 = arith.constant 0 : i32
    return %arg0, %c0_i32 : i32, i32
  }
  func.func @transform_1(%arg0: i32) -> (i32, i32) {
    %c0_i32 = arith.constant 0 : i32
    %c0_i32_0 = arith.constant 0 : i32
    %c0_i32_1 = arith.constant 0 : i32
    return %c0_i32, %c0_i32_0 : i32, i32
  }
  func.func @transform_2(%arg0: i32) -> (i32, i32) {
    %c0_i32 = arith.constant 0 : i32
    %c0_i32_0 = arith.constant 0 : i32
    return %arg0, %c0_i32 : i32, i32
  }
}

module attributes {stable_mosaic.version = 11 : i64} {
  func.func @_mh_emb_resident_kernel(%arg0: i32, %arg1: memref<2x128xi8, #tpu.memory_space<vmem>>, %arg2: memref<32x32xf32, #tpu.memory_space<vmem>>, %arg3: memref<2x128xf32, #tpu.memory_space<vmem>>) attributes {dimension_semantics = [#tpu.dimension_semantics<parallel>], iteration_bounds = array<i64: 1>, scalar_prefetch = 0 : i64, scratch_operands = 0 : i64, tpu.core_type = #tpu.core_type<tc>, window_params = [{transform_indices = @transform_0, window_bounds = array<i64: 2, 128>}, {pipeline_mode = #tpu.pipeline_mode<synchronous>, transform_indices = @transform_1, window_bounds = array<i64: 32, 32>}, {transform_indices = @transform_2, window_bounds = array<i64: 2, 128>}]} {
    %c0 = arith.constant 0 : index
    %c0_0 = arith.constant 0 : index
    %0 = vector.load %arg2[%c0, %c0_0] : memref<32x32xf32, #tpu.memory_space<vmem>>, vector<32x32xf32>
    %c0_1 = arith.constant 0 : index
    %c0_2 = arith.constant 0 : index
    %1 = vector.load %arg1[%c0_1, %c0_2] : memref<2x128xi8, #tpu.memory_space<vmem>>, vector<2x128xi8>
    %2 = arith.sitofp %1 : vector<2x128xi8> to vector<2x128xf32>
    %3 = vector.extract_strided_slice %2 {offsets = [0, 0], sizes = [2, 32], strides = [1, 1]} : vector<2x128xf32> to vector<2x32xf32>
    %cst = arith.constant dense<0.000000e+00> : vector<2x32xf32>
    %4 = tpu.matmul %3, %0, %cst {dimension_numbers = #tpu.dot_dimension_numbers<[1], [0], [0], [1], [0, 0, 1, 1], [], []>} : vector<2x32xf32>, vector<32x32xf32>, vector<2x32xf32> -> vector<2x32xf32>
    %c0_3 = arith.constant 0 : index
    %c0_4 = arith.constant 0 : index
    %5 = vector.load %arg3[%c0_3, %c0_4] : memref<2x128xf32, #tpu.memory_space<vmem>>, vector<2x32xf32>
    tpu.vector_store %arg3[%c0_3, %c0_4], %4 {strides = array<i32>} : memref<2x128xf32, #tpu.memory_space<vmem>>, vector<2x32xf32>,
    %6 = vector.extract_strided_slice %2 {offsets = [0, 32], sizes = [2, 32], strides = [1, 1]} : vector<2x128xf32> to vector<2x32xf32>
    %cst_5 = arith.constant dense<0.000000e+00> : vector<2x32xf32>
    %7 = tpu.matmul %6, %0, %cst_5 {dimension_numbers = #tpu.dot_dimension_numbers<[1], [0], [0], [1], [0, 0, 1, 1], [], []>} : vector<2x32xf32>, vector<32x32xf32>, vector<2x32xf32> -> vector<2x32xf32>
    %c0_6 = arith.constant 0 : index
    %c32 = arith.constant 32 : index
    %8 = vector.load %arg3[%c0_6, %c32] : memref<2x128xf32, #tpu.memory_space<vmem>>, vector<2x32xf32>
    tpu.vector_store %arg3[%c0_6, %c32], %7 {strides = array<i32>} : memref<2x128xf32, #tpu.memory_space<vmem>>, vector<2x32xf32>,
    %9 = vector.extract_strided_slice %2 {offsets = [0, 64], sizes = [2, 32], strides = [1, 1]} : vector<2x128xf32> to vector<2x32xf32>
    %cst_7 = arith.constant dense<0.000000e+00> : vector<2x32xf32>
    %10 = tpu.matmul %9, %0, %cst_7 {dimension_numbers = #tpu.dot_dimension_numbers<[1], [0], [0], [1], [0, 0, 1, 1], [], []>} : vector<2x32xf32>, vector<32x32xf32>, vector<2x32xf32> -> vector<2x32xf32>
    %c0_8 = arith.constant 0 : index
    %c64 = arith.constant 64 : index
    %11 = vector.load %arg3[%c0_8, %c64] : memref<2x128xf32, #tpu.memory_space<vmem>>, vector<2x32xf32>
    tpu.vector_store %arg3[%c0_8, %c64], %10 {strides = array<i32>} : memref<2x128xf32, #tpu.memory_space<vmem>>, vector<2x32xf32>,
    %12 = vector.extract_strided_slice %2 {offsets = [0, 96], sizes = [2, 32], strides = [1, 1]} : vector<2x128xf32> to vector<2x32xf32>
    %cst_9 = arith.constant dense<0.000000e+00> : vector<2x32xf32>
    %13 = tpu.matmul %12, %0, %cst_9 {dimension_numbers = #tpu.dot_dimension_numbers<[1], [0], [0], [1], [0, 0, 1, 1], [], []>} : vector<2x32xf32>, vector<32x32xf32>, vector<2x32xf32> -> vector<2x32xf32>
    %c0_10 = arith.constant 0 : index
    %c96 = arith.constant 96 : index
    %14 = vector.load %arg3[%c0_10, %c96] : memref<2x128xf32, #tpu.memory_space<vmem>>, vector<2x32xf32>
    tpu.vector_store %arg3[%c0_10, %c96], %13 {strides = array<i32>} : memref<2x128xf32, #tpu.memory_space<vmem>>, vector<2x32xf32>,
    return
  }
  func.func @transform_0(%arg0: i32) -> (i32, i32) {
    %c0_i32 = arith.constant 0 : i32
    %c0_i32_0 = arith.constant 0 : i32
    return %arg0, %c0_i32 : i32, i32
  }
  func.func @transform_1(%arg0: i32) -> (i32, i32) {
    %c0_i32 = arith.constant 0 : i32
    %c0_i32_0 = arith.constant 0 : i32
    %c0_i32_1 = arith.constant 0 : i32
    return %c0_i32, %c0_i32_0 : i32, i32
  }
  func.func @transform_2(%arg0: i32) -> (i32, i32) {
    %c0_i32 = arith.constant 0 : i32
    %c0_i32_0 = arith.constant 0 : i32
    return %arg0, %c0_i32 : i32, i32
  }
}

</mosaic_0001>

<llo_original>
// kernel: tpu_custom_call.1
$region0: #{tpu_custom_call.1}
  #allocation0 [shape = 'u32[]', space=smem, size = 0x4, offset = 0x4, fixed_abs, tag = 'smem constant byte address 0x4 - core index']
  #allocation1 [shape = 'u32[144,128]{1,0:T(1,128)}', space=vmem, size = 0x12000, scoped, tag = 'internal scratch']
  %s0 = inlined_call_operand.hbm [shape: s8[2,128], index: 0, kind: input, shape index: {}]
  %s1 = inlined_call_operand.hbm [shape: f32[32,32], index: 1, kind: input, shape index: {}]
  %s2 = inlined_call_operand.hbm [shape: f32[2,128], index: 2, kind: output, shape index: {}]
  %s3 = sld [smem:[#allocation0]]
  $region26: #{tpu_custom_call.1} parent=0
    _
  %s5 = ssub.s32 1, %s3
  %s6 = scalar_select 0, %s5, %s3
  $region1: #{tpu_custom_call.1} parent=0
    #allocation2 [shape = 'u8[512]{0}', space=vmem, size = 0x400, scoped, tag = 'input window, operand 0, single buffered']
    #allocation3 [shape = 's32[1]{0}', space=sflag, size = 0x4, scoped, tag = 'scoped memory for tpu_custom_call.1']
    #allocation4 [shape = 's32[1]{0}', space=sflag, size = 0x4, scoped, tag = 'scoped memory for tpu_custom_call.1']
    #allocation5 [shape = 'u8[16384]{0}', space=vmem, size = 0x4000, scoped, tag = 'input window, operand 1, single buffered']
    #allocation6 [shape = 's32[1]{0}', space=sflag, size = 0x4, scoped, tag = 'scoped memory for tpu_custom_call.1']
    #allocation7 [shape = 'u8[1024]{0}', space=vmem, size = 0x400, scoped, tag = 'output window, operand 0, single buffered']
    %7 = vsyncpa [#allocation3], 0
    %8 = vsyncpa [#allocation6], 0
    %9 = vsyncpa [#allocation4], 0
    // Predicated region
    $region2: #{tpu_custom_call.1} parent=1 // pred_check
      _
    $region3: #{tpu_custom_call.1} parent=1 // pred_check_branch
      %11 = sbr.rel (0) target = $region5
    $region4: #{tpu_custom_call.1} parent=1 // pred_region
      %s13 = ssub.s32 16, 16
      %14 = vsyncadd [#allocation3], %s13
      %s16 = sshll.u32 [#allocation2], 4
      %s17 = int_to_ptr.vmem [resolvable:$true] %s16
      %19 = dma.hbm_to_vmem [thread:$0]  %s0, 16, %s17, [#allocation3]
    $region5: #{tpu_custom_call.1} parent=1 // pred_fallthru
      _
    // Predicated region
    $region6: #{tpu_custom_call.1} parent=1 // pred_check
      _
    $region7: #{tpu_custom_call.1} parent=1 // pred_check_branch
      %21 = sbr.rel (0) target = $region9
    $region8: #{tpu_custom_call.1} parent=1 // pred_region
      %s23 = ssub.s32 512, 512
      %24 = vsyncadd [#allocation6], %s23
      %s25 = sshll.u32 [#allocation5], 4
      %s26 = int_to_ptr.vmem [resolvable:$true] %s25
      %31 = dma.hbm_to_vmem [thread:$0]  %s1, 512, %s26, [#allocation6], 128, 128, 8
    $region9: #{tpu_custom_call.1} parent=1 // pred_fallthru
      _
    // Predicated region
    $region10: #{tpu_custom_call.1} parent=1 // pred_check
      _
    $region11: #{tpu_custom_call.1} parent=1 // pred_check_branch
      %33 = sbr.rel (0) target = $region13
    $region12: #{tpu_custom_call.1} parent=1 // pred_region
      %34 = dma.done [#allocation3], 16
    $region13: #{tpu_custom_call.1} parent=1 // pred_fallthru
      _
    // Predicated region
    $region14: #{tpu_custom_call.1} parent=1 // pred_check
      _
    $region15: #{tpu_custom_call.1} parent=1 // pred_check_branch
      %36 = sbr.rel (0) target = $region17
    $region16: #{tpu_custom_call.1} parent=1 // pred_region
      %37 = dma.done [#allocation6], 512
    $region17: #{tpu_custom_call.1} parent=1 // pred_fallthru
      _
    %v38 = vld [vmem:[#allocation5] sm:$0xff]
    %v39 = vld [vmem:[#allocation5 + $0x8] sm:$0xff]
    %v40 = vld [vmem:[#allocation5 + $0x10] sm:$0xff]
    %v41 = vld [vmem:[#allocation5 + $0x18] sm:$0xff]
    %v42 = vld [vmem:[#allocation2] sm:$0x1]
    %v43 = vunpack.c.0.s8 %v42
    %v44 = vcvt.s32.f32 %v43
    %vm45 = vcmask 261120
    %v47 = vsel %vm45, %v44, 0
    %49 = vmatprep.subr.mxu0 0.0
    %50 = vmatpush1.msra.mxu0 0.0
    %51 = vmatprep.subr.mxu0 0.0
    %52 = vmatpush1.msra.mxu0 0.0
    %53 = vmatprep.subr.mxu0 0.0
    %54 = vmatpush1.msra.mxu0 0.0
    %55 = vmatprep.subr.mxu0 0.0
    %56 = vmatpush1.msra.mxu0 0.0
    %57 = vmatprep.subr.mxu0 0.0
    %58 = vmatpush1.msra.mxu0 0.0
    %59 = vmatprep.subr.mxu0 0.0
    %60 = vmatpush1.msra.mxu0 0.0
    %61 = vmatprep.subr.mxu0 0.0
    %62 = vmatpush1.msra.mxu0 0.0
    %63 = vmatprep.subr.mxu0 0.0
    %64 = vmatpush1.msra.mxu0 0.0
    %65 = vmatprep.subr.mxu0 0.0
    %66 = vmatpush1.msra.mxu0 0.0
    %67 = vmatprep.subr.mxu0 0.0
    %68 = vmatpush1.msra.mxu0 0.0
    %69 = vmatprep.subr.mxu0 0.0
    %70 = vmatpush1.msra.mxu0 0.0
    %71 = vmatprep.subr.mxu0 0.0
    %72 = vmatpush1.msra.mxu0 0.0
    %73 = vmatprep.subr.mxu0 0.0
    %74 = vmatpush1.msra.mxu0 %v41
    %75 = vmatprep.subr.mxu0 0.0
    %76 = vmatpush1.msra.mxu0 %v40
    %77 = vmatprep.subr.mxu0 0.0
    %78 = vmatpush1.msra.mxu0 %v39
    %79 = vmatprep.subr.mxu0 0.0
    %80 = vmatpush1.msra.mxu0 %v38
    %81 = vmatprep.subr.mxu0 0.0
    %82 = vmatpush2.msra.mxu0 0.0
    %83 = vmatprep.subr.mxu0 0.0
    %84 = vmatpush2.msra.mxu0 0.0
    %85 = vmatprep.subr.mxu0 0.0
    %86 = vmatpush2.msra.mxu0 0.0
    %87 = vmatprep.subr.mxu0 0.0
    %88 = vmatpush2.msra.mxu0 0.0
    %89 = vmatprep.subr.mxu0 0.0
    %90 = vmatpush2.msra.mxu0 0.0
    %91 = vmatprep.subr.mxu0 0.0
    %92 = vmatpush2.msra.mxu0 0.0
    %93 = vmatprep.subr.mxu0 0.0
    %94 = vmatpush2.msra.mxu0 0.0
    %95 = vmatprep.subr.mxu0 0.0
    %96 = vmatpush2.msra.mxu0 0.0
    %97 = vmatprep.subr.mxu0 0.0
    %98 = vmatpush2.msra.mxu0 0.0
    %99 = vmatprep.subr.mxu0 0.0
    %100 = vmatpush2.msra.mxu0 0.0
    %101 = vmatprep.subr.mxu0 0.0
    %102 = vmatpush2.msra.mxu0 0.0
    %103 = vmatprep.subr.mxu0 0.0
    %104 = vmatpush2.msra.mxu0 0.0
    %105 = vmatprep.subr.mxu0 0.0
    %106 = vmatpush2.msra.mxu0 0.0
    %107 = vmatprep.subr.mxu0 0.0
    %108 = vmatpush2.msra.mxu0 0.0
    %109 = vmatprep.subr.mxu0 0.0
    %110 = vmatpush2.msra.mxu0 0.0
    %111 = vmatprep.subr.mxu0 0.0
    %112 = vmatpush2.msra.mxu0 0.0
    %113 = vmatprep.mubr.f32.mxu0 0.0
    %114 = vmatmul.mubr.f32.gmra.mxu0 %v47
    %v115 = vpop.f32.mrf.mxu0
    %v116 = vadd.f32 0.0, %v115
    %v117 = vpop.f32.mrf.mxu0
    %118 = vdwg.mxu0
    %vm119 = vcmask 254976
    %120 = vst.msk [vmem:[#allocation7] sm:$0x3] %vm119, %v116
    %121 = vrot.lane.b32.xlu0 %v44, 96
    %v122 = vpop.permute.xlu0 %121
    %v123 = vsel %vm45, %v122, 0
    %125 = vmatprep.subr.mxu0 0.0
    %126 = vmatpush1.msra.mxu0 0.0
    %127 = vmatprep.subr.mxu0 0.0
    %128 = vmatpush1.msra.mxu0 0.0
    %129 = vmatprep.subr.mxu0 0.0
    %130 = vmatpush1.msra.mxu0 0.0
    %131 = vmatprep.subr.mxu0 0.0
    %132 = vmatpush1.msra.mxu0 0.0
    %133 = vmatprep.subr.mxu0 0.0
    %134 = vmatpush1.msra.mxu0 0.0
    %135 = vmatprep.subr.mxu0 0.0
    %136 = vmatpush1.msra.mxu0 0.0
    %137 = vmatprep.subr.mxu0 0.0
    %138 = vmatpush1.msra.mxu0 0.0
    %139 = vmatprep.subr.mxu0 0.0
    %140 = vmatpush1.msra.mxu0 0.0
    %141 = vmatprep.subr.mxu0 0.0
    %142 = vmatpush1.msra.mxu0 0.0
    %143 = vmatprep.subr.mxu0 0.0
    %144 = vmatpush1.msra.mxu0 0.0
    %145 = vmatprep.subr.mxu0 0.0
    %146 = vmatpush1.msra.mxu0 0.0
    %147 = vmatprep.subr.mxu0 0.0
    %148 = vmatpush1.msra.mxu0 0.0
    %149 = vmatprep.subr.mxu0 0.0
    %150 = vmatpush1.msra.mxu0 %v41
    %151 = vmatprep.subr.mxu0 0.0
    %152 = vmatpush1.msra.mxu0 %v40
    %153 = vmatprep.subr.mxu0 0.0
    %154 = vmatpush1.msra.mxu0 %v39
    %155 = vmatprep.subr.mxu0 0.0
    %156 = vmatpush1.msra.mxu0 %v38
    %157 = vmatprep.subr.mxu0 0.0
    %158 = vmatpush2.msra.mxu0 0.0
    %159 = vmatprep.subr.mxu0 0.0
    %160 = vmatpush2.msra.mxu0 0.0
    %161 = vmatprep.subr.mxu0 0.0
    %162 = vmatpush2.msra.mxu0 0.0
    %163 = vmatprep.subr.mxu0 0.0
    %164 = vmatpush2.msra.mxu0 0.0
    %165 = vmatprep.subr.mxu0 0.0
    %166 = vmatpush2.msra.mxu0 0.0
    %167 = vmatprep.subr.mxu0 0.0
    %168 = vmatpush2.msra.mxu0 0.0
    %169 = vmatprep.subr.mxu0 0.0
    %170 = vmatpush2.msra.mxu0 0.0
    %171 = vmatprep.subr.mxu0 0.0
    %172 = vmatpush2.msra.mxu0 0.0
    %173 = vmatprep.subr.mxu0 0.0
    %174 = vmatpush2.msra.mxu0 0.0
    %175 = vmatprep.subr.mxu0 0.0
    %176 = vmatpush2.msra.mxu0 0.0
    %177 = vmatprep.subr.mxu0 0.0
    %178 = vmatpush2.msra.mxu0 0.0
    %179 = vmatprep.subr.mxu0 0.0
    %180 = vmatpush2.msra.mxu0 0.0
    %181 = vmatprep.subr.mxu0 0.0
    %182 = vmatpush2.msra.mxu0 0.0
    %183 = vmatprep.subr.mxu0 0.0
    %184 = vmatpush2.msra.mxu0 0.0
    %185 = vmatprep.subr.mxu0 0.0
    %186 = vmatpush2.msra.mxu0 0.0
    %187 = vmatprep.subr.mxu0 0.0
    %188 = vmatpush2.msra.mxu0 0.0
    %189 = vmatprep.mubr.f32.mxu0 0.0
    %190 = vmatmul.mubr.f32.gmra.mxu0 %v123
    %v191 = vpop.f32.mrf.mxu0
    %v192 = vadd.f32 0.0, %v191
    %v193 = vpop.f32.mrf.mxu0
    %194 = vdwg.mxu0
    %196 = vrot.lane.b32.xlu0 %v192, 32
    %v197 = vpop.permute.xlu0 %196
    %vm199 = vcmask 517376
    %200 = vst.msk [vmem:[#allocation7] sm:$0x3] %vm199, %v197
    %201 = vrot.lane.b32.xlu0 %v44, 64
    %v202 = vpop.permute.xlu0 %201
    %v203 = vsel %vm45, %v202, 0
    %205 = vmatprep.subr.mxu0 0.0
    %206 = vmatpush1.msra.mxu0 0.0
    %207 = vmatprep.subr.mxu0 0.0
    %208 = vmatpush1.msra.mxu0 0.0
    %209 = vmatprep.subr.mxu0 0.0
    %210 = vmatpush1.msra.mxu0 0.0
    %211 = vmatprep.subr.mxu0 0.0
    %212 = vmatpush1.msra.mxu0 0.0
    %213 = vmatprep.subr.mxu0 0.0
    %214 = vmatpush1.msra.mxu0 0.0
    %215 = vmatprep.subr.mxu0 0.0
    %216 = vmatpush1.msra.mxu0 0.0
    %217 = vmatprep.subr.mxu0 0.0
    %218 = vmatpush1.msra.mxu0 0.0
    %219 = vmatprep.subr.mxu0 0.0
    %220 = vmatpush1.msra.mxu0 0.0
    %221 = vmatprep.subr.mxu0 0.0
    %222 = vmatpush1.msra.mxu0 0.0
    %223 = vmatprep.subr.mxu0 0.0
    %224 = vmatpush1.msra.mxu0 0.0
    %225 = vmatprep.subr.mxu0 0.0
    %226 = vmatpush1.msra.mxu0 0.0
    %227 = vmatprep.subr.mxu0 0.0
    %228 = vmatpush1.msra.mxu0 0.0
    %229 = vmatprep.subr.mxu0 0.0
    %230 = vmatpush1.msra.mxu0 %v41
    %231 = vmatprep.subr.mxu0 0.0
    %232 = vmatpush1.msra.mxu0 %v40
    %233 = vmatprep.subr.mxu0 0.0
    %234 = vmatpush1.msra.mxu0 %v39
    %235 = vmatprep.subr.mxu0 0.0
    %236 = vmatpush1.msra.mxu0 %v38
    %237 = vmatprep.subr.mxu0 0.0
    %238 = vmatpush2.msra.mxu0 0.0
    %239 = vmatprep.subr.mxu0 0.0
    %240 = vmatpush2.msra.mxu0 0.0
    %241 = vmatprep.subr.mxu0 0.0
    %242 = vmatpush2.msra.mxu0 0.0
    %243 = vmatprep.subr.mxu0 0.0
    %244 = vmatpush2.msra.mxu0 0.0
    %245 = vmatprep.subr.mxu0 0.0
    %246 = vmatpush2.msra.mxu0 0.0
    %247 = vmatprep.subr.mxu0 0.0
    %248 = vmatpush2.msra.mxu0 0.0
    %249 = vmatprep.subr.mxu0 0.0
    %250 = vmatpush2.msra.mxu0 0.0
    %251 = vmatprep.subr.mxu0 0.0
    %252 = vmatpush2.msra.mxu0 0.0
    %253 = vmatprep.subr.mxu0 0.0
    %254 = vmatpush2.msra.mxu0 0.0
    %255 = vmatprep.subr.mxu0 0.0
    %256 = vmatpush2.msra.mxu0 0.0
    %257 = vmatprep.subr.mxu0 0.0
    %258 = vmatpush2.msra.mxu0 0.0
    %259 = vmatprep.subr.mxu0 0.0
    %260 = vmatpush2.msra.mxu0 0.0
    %261 = vmatprep.subr.mxu0 0.0
    %262 = vmatpush2.msra.mxu0 0.0
    %263 = vmatprep.subr.mxu0 0.0
    %264 = vmatpush2.msra.mxu0 0.0
    %265 = vmatprep.subr.mxu0 0.0
    %266 = vmatpush2.msra.mxu0 0.0
    %267 = vmatprep.subr.mxu0 0.0
    %268 = vmatpush2.msra.mxu0 0.0
    %269 = vmatprep.mubr.f32.mxu0 0.0
    %270 = vmatmul.mubr.f32.gmra.mxu0 %v203
    %v271 = vpop.f32.mrf.mxu0
    %v272 = vadd.f32 0.0, %v271
    %v273 = vpop.f32.mrf.mxu0
    %274 = vdwg.mxu0
    %276 = vrot.lane.b32.xlu0 %v272, 64
    %v277 = vpop.permute.xlu0 %276
    %vm279 = vcmask 779776
    %280 = vst.msk [vmem:[#allocation7] sm:$0x3] %vm279, %v277
    %281 = vrot.lane.b32.xlu0 %v44, 32
    %v282 = vpop.permute.xlu0 %281
    %v283 = vsel %vm45, %v282, 0
    %285 = vmatprep.subr.mxu0 0.0
    %286 = vmatpush1.msra.mxu0 0.0
    %287 = vmatprep.subr.mxu0 0.0
    %288 = vmatpush1.msra.mxu0 0.0
    %289 = vmatprep.subr.mxu0 0.0
    %290 = vmatpush1.msra.mxu0 0.0
    %291 = vmatprep.subr.mxu0 0.0
    %292 = vmatpush1.msra.mxu0 0.0
    %293 = vmatprep.subr.mxu0 0.0
    %294 = vmatpush1.msra.mxu0 0.0
    %295 = vmatprep.subr.mxu0 0.0
    %296 = vmatpush1.msra.mxu0 0.0
    %297 = vmatprep.subr.mxu0 0.0
    %298 = vmatpush1.msra.mxu0 0.0
    %299 = vmatprep.subr.mxu0 0.0
    %300 = vmatpush1.msra.mxu0 0.0
    %301 = vmatprep.subr.mxu0 0.0
    %302 = vmatpush1.msra.mxu0 0.0
    %303 = vmatprep.subr.mxu0 0.0
    %304 = vmatpush1.msra.mxu0 0.0
    %305 = vmatprep.subr.mxu0 0.0
    %306 = vmatpush1.msra.mxu0 0.0
    %307 = vmatprep.subr.mxu0 0.0
    %308 = vmatpush1.msra.mxu0 0.0
    %309 = vmatprep.subr.mxu0 0.0
    %310 = vmatpush1.msra.mxu0 %v41
    %311 = vmatprep.subr.mxu0 0.0
    %312 = vmatpush1.msra.mxu0 %v40
    %313 = vmatprep.subr.mxu0 0.0
    %314 = vmatpush1.msra.mxu0 %v39
    %315 = vmatprep.subr.mxu0 0.0
    %316 = vmatpush1.msra.mxu0 %v38
    %317 = vmatprep.subr.mxu0 0.0
    %318 = vmatpush2.msra.mxu0 0.0
    %319 = vmatprep.subr.mxu0 0.0
    %320 = vmatpush2.msra.mxu0 0.0
    %321 = vmatprep.subr.mxu0 0.0
    %322 = vmatpush2.msra.mxu0 0.0
    %323 = vmatprep.subr.mxu0 0.0
    %324 = vmatpush2.msra.mxu0 0.0
    %325 = vmatprep.subr.mxu0 0.0
    %326 = vmatpush2.msra.mxu0 0.0
    %327 = vmatprep.subr.mxu0 0.0
    %328 = vmatpush2.msra.mxu0 0.0
    %329 = vmatprep.subr.mxu0 0.0
    %330 = vmatpush2.msra.mxu0 0.0
    %331 = vmatprep.subr.mxu0 0.0
    %332 = vmatpush2.msra.mxu0 0.0
    %333 = vmatprep.subr.mxu0 0.0
    %334 = vmatpush2.msra.mxu0 0.0
    %335 = vmatprep.subr.mxu0 0.0
    %336 = vmatpush2.msra.mxu0 0.0
    %337 = vmatprep.subr.mxu0 0.0
    %338 = vmatpush2.msra.mxu0 0.0
    %339 = vmatprep.subr.mxu0 0.0
    %340 = vmatpush2.msra.mxu0 0.0
    %341 = vmatprep.subr.mxu0 0.0
    %342 = vmatpush2.msra.mxu0 0.0
    %343 = vmatprep.subr.mxu0 0.0
    %344 = vmatpush2.msra.mxu0 0.0
    %345 = vmatprep.subr.mxu0 0.0
    %346 = vmatpush2.msra.mxu0 0.0
    %347 = vmatprep.subr.mxu0 0.0
    %348 = vmatpush2.msra.mxu0 0.0
    %349 = vmatprep.mubr.f32.mxu0 0.0
    %350 = vmatmul.mubr.f32.gmra.mxu0 %v283
    %v351 = vpop.f32.mrf.mxu0
    %v352 = vadd.f32 0.0, %v351
    %v353 = vpop.f32.mrf.mxu0
    %354 = vdwg.mxu0
    %356 = vrot.lane.b32.xlu0 %v352, 96
    %v357 = vpop.permute.xlu0 %356
    %vm359 = vcmask 1042176
    %360 = vst.msk [vmem:[#allocation7] sm:$0x3] %vm359, %v357
    // Predicated region
    $region18: #{tpu_custom_call.1} parent=1 // pred_check
      _
    $region19: #{tpu_custom_call.1} parent=1 // pred_check_branch
      %362 = sbr.rel (0) target = $region21
    $region20: #{tpu_custom_call.1} parent=1 // pred_region
      %s364 = ssub.s32 32, 32
      %365 = vsyncadd [#allocation4], %s364
      %s367 = sshll.u32 [#allocation7], 4
      %s368 = int_to_ptr.vmem [resolvable:$true] %s367
      %370 = dma.vmem_to_hbm [thread:$0]  %s368, 32, %s2, [#allocation4]
    $region21: #{tpu_custom_call.1} parent=1 // pred_fallthru
      _
    // Predicated region
    $region22: #{tpu_custom_call.1} parent=1 // pred_check
      _
    $region23: #{tpu_custom_call.1} parent=1 // pred_check_branch
      %372 = sbr.rel (0) target = $region25
    $region24: #{tpu_custom_call.1} parent=1 // pred_region
      %373 = dma.done [#allocation4], 32
    $region25: #{tpu_custom_call.1} parent=1 // pred_fallthru
      _
    %374 = vsyncpa [#allocation3], 1
    %375 = vsyncpa [#allocation6], 1
    %376 = vsyncpa [#allocation4], 1

// kernel: tpu_custom_call.1
$region0: #{tpu_custom_call.1}
  #allocation0 [shape = 'u32[]', space=smem, size = 0x4, offset = 0x4, fixed_abs, tag = 'smem constant byte address 0x4 - core index']
  #allocation1 [shape = 'u32[144,128]{1,0:T(1,128)}', space=vmem, size = 0x12000, scoped, tag = 'internal scratch']
  %s0 = inlined_call_operand.hbm [shape: s8[2,128], index: 0, kind: input, shape index: {}]
  %s1 = inlined_call_operand.hbm [shape: f32[32,32], index: 1, kind: input, shape index: {}]
  %s2 = inlined_call_operand.hbm [shape: f32[2,128], index: 2, kind: output, shape index: {}]
  %s3 = sld [smem:[#allocation0]]
  $region26: #{tpu_custom_call.1} parent=0
    _
  %s5 = ssub.s32 1, %s3
  %s6 = scalar_select 0, %s5, %s3
  $region1: #{tpu_custom_call.1} parent=0
    #allocation2 [shape = 'u8[512]{0}', space=vmem, size = 0x400, scoped, tag = 'input window, operand 0, single buffered']
    #allocation3 [shape = 's32[1]{0}', space=sflag, size = 0x4, scoped, tag = 'scoped memory for tpu_custom_call.1']
    #allocation4 [shape = 's32[1]{0}', space=sflag, size = 0x4, scoped, tag = 'scoped memory for tpu_custom_call.1']
    #allocation5 [shape = 'u8[16384]{0}', space=vmem, size = 0x4000, scoped, tag = 'input window, operand 1, single buffered']
    #allocation6 [shape = 's32[1]{0}', space=sflag, size = 0x4, scoped, tag = 'scoped memory for tpu_custom_call.1']
    #allocation7 [shape = 'u8[1024]{0}', space=vmem, size = 0x400, scoped, tag = 'output window, operand 0, single buffered']
    %7 = vsyncpa [#allocation3], 0
    %8 = vsyncpa [#allocation6], 0
    %9 = vsyncpa [#allocation4], 0
    // Predicated region
    $region2: #{tpu_custom_call.1} parent=1 // pred_check
      _
    $region3: #{tpu_custom_call.1} parent=1 // pred_check_branch
      %11 = sbr.rel (0) target = $region5
    $region4: #{tpu_custom_call.1} parent=1 // pred_region
      %s13 = ssub.s32 16, 16
      %14 = vsyncadd [#allocation3], %s13
      %s16 = sshll.u32 [#allocation2], 4
      %s17 = int_to_ptr.vmem [resolvable:$true] %s16
      %19 = dma.hbm_to_vmem [thread:$0]  %s0, 16, %s17, [#allocation3]
    $region5: #{tpu_custom_call.1} parent=1 // pred_fallthru
      _
    // Predicated region
    $region6: #{tpu_custom_call.1} parent=1 // pred_check
      _
    $region7: #{tpu_custom_call.1} parent=1 // pred_check_branch
      %21 = sbr.rel (0) target = $region9
    $region8: #{tpu_custom_call.1} parent=1 // pred_region
      %s23 = ssub.s32 512, 512
      %24 = vsyncadd [#allocation6], %s23
      %s25 = sshll.u32 [#allocation5], 4
      %s26 = int_to_ptr.vmem [resolvable:$true] %s25
      %31 = dma.hbm_to_vmem [thread:$0]  %s1, 512, %s26, [#allocation6], 128, 128, 8
    $region9: #{tpu_custom_call.1} parent=1 // pred_fallthru
      _
    // Predicated region
    $region10: #{tpu_custom_call.1} parent=1 // pred_check
      _
    $region11: #{tpu_custom_call.1} parent=1 // pred_check_branch
      %33 = sbr.rel (0) target = $region13
    $region12: #{tpu_custom_call.1} parent=1 // pred_region
      %34 = dma.done [#allocation3], 16
    $region13: #{tpu_custom_call.1} parent=1 // pred_fallthru
      _
    // Predicated region
    $region14: #{tpu_custom_call.1} parent=1 // pred_check
      _
    $region15: #{tpu_custom_call.1} parent=1 // pred_check_branch
      %36 = sbr.rel (0) target = $region17
    $region16: #{tpu_custom_call.1} parent=1 // pred_region
      %37 = dma.done [#allocation6], 512
    $region17: #{tpu_custom_call.1} parent=1 // pred_fallthru
      _
    %v38 = vld [vmem:[#allocation5] sm:$0xff]
    %v39 = vld [vmem:[#allocation5 + $0x8] sm:$0xff]
    %v40 = vld [vmem:[#allocation5 + $0x10] sm:$0xff]
    %v41 = vld [vmem:[#allocation5 + $0x18] sm:$0xff]
    %v42 = vld [vmem:[#allocation2] sm:$0x1]
    %v43 = vunpack.c.0.s8 %v42
    %v44 = vcvt.s32.f32 %v43
    %vm45 = vcmask 261120
    %v47 = vsel %vm45, %v44, 0
    %49 = vmatprep.subr.mxu0 0.0
    %50 = vmatpush1.msra.mxu0 0.0
    %51 = vmatprep.subr.mxu0 0.0
    %52 = vmatpush1.msra.mxu0 0.0
    %53 = vmatprep.subr.mxu0 0.0
    %54 = vmatpush1.msra.mxu0 0.0
    %55 = vmatprep.subr.mxu0 0.0
    %56 = vmatpush1.msra.mxu0 0.0
    %57 = vmatprep.subr.mxu0 0.0
    %58 = vmatpush1.msra.mxu0 0.0
    %59 = vmatprep.subr.mxu0 0.0
    %60 = vmatpush1.msra.mxu0 0.0
    %61 = vmatprep.subr.mxu0 0.0
    %62 = vmatpush1.msra.mxu0 0.0
    %63 = vmatprep.subr.mxu0 0.0
    %64 = vmatpush1.msra.mxu0 0.0
    %65 = vmatprep.subr.mxu0 0.0
    %66 = vmatpush1.msra.mxu0 0.0
    %67 = vmatprep.subr.mxu0 0.0
    %68 = vmatpush1.msra.mxu0 0.0
    %69 = vmatprep.subr.mxu0 0.0
    %70 = vmatpush1.msra.mxu0 0.0
    %71 = vmatprep.subr.mxu0 0.0
    %72 = vmatpush1.msra.mxu0 0.0
    %73 = vmatprep.subr.mxu0 0.0
    %74 = vmatpush1.msra.mxu0 %v41
    %75 = vmatprep.subr.mxu0 0.0
    %76 = vmatpush1.msra.mxu0 %v40
    %77 = vmatprep.subr.mxu0 0.0
    %78 = vmatpush1.msra.mxu0 %v39
    %79 = vmatprep.subr.mxu0 0.0
    %80 = vmatpush1.msra.mxu0 %v38
    %81 = vmatprep.subr.mxu0 0.0
    %82 = vmatpush2.msra.mxu0 0.0
    %83 = vmatprep.subr.mxu0 0.0
    %84 = vmatpush2.msra.mxu0 0.0
    %85 = vmatprep.subr.mxu0 0.0
    %86 = vmatpush2.msra.mxu0 0.0
    %87 = vmatprep.subr.mxu0 0.0
    %88 = vmatpush2.msra.mxu0 0.0
    %89 = vmatprep.subr.mxu0 0.0
    %90 = vmatpush2.msra.mxu0 0.0
    %91 = vmatprep.subr.mxu0 0.0
    %92 = vmatpush2.msra.mxu0 0.0
    %93 = vmatprep.subr.mxu0 0.0
    %94 = vmatpush2.msra.mxu0 0.0
    %95 = vmatprep.subr.mxu0 0.0
    %96 = vmatpush2.msra.mxu0 0.0
    %97 = vmatprep.subr.mxu0 0.0
    %98 = vmatpush2.msra.mxu0 0.0
    %99 = vmatprep.subr.mxu0 0.0
    %100 = vmatpush2.msra.mxu0 0.0
    %101 = vmatprep.subr.mxu0 0.0
    %102 = vmatpush2.msra.mxu0 0.0
    %103 = vmatprep.subr.mxu0 0.0
    %104 = vmatpush2.msra.mxu0 0.0
    %105 = vmatprep.subr.mxu0 0.0
    %106 = vmatpush2.msra.mxu0 0.0
    %107 = vmatprep.subr.mxu0 0.0
    %108 = vmatpush2.msra.mxu0 0.0
    %109 = vmatprep.subr.mxu0 0.0
    %110 = vmatpush2.msra.mxu0 0.0
    %111 = vmatprep.subr.mxu0 0.0
    %112 = vmatpush2.msra.mxu0 0.0
    %113 = vmatprep.mubr.f32.mxu0 0.0
    %114 = vmatmul.mubr.f32.gmra.mxu0 %v47
    %v115 = vpop.f32.mrf.mxu0
    %v116 = vadd.f32 0.0, %v115
    %v117 = vpop.f32.mrf.mxu0
    %118 = vdwg.mxu0
    %vm119 = vcmask 254976
    %120 = vst.msk [vmem:[#allocation7] sm:$0x3] %vm119, %v116
    %121 = vrot.lane.b32.xlu0 %v44, 96
    %v122 = vpop.permute.xlu0 %121
    %v123 = vsel %vm45, %v122, 0
    %125 = vmatprep.subr.mxu0 0.0
    %126 = vmatpush1.msra.mxu0 0.0
    %127 = vmatprep.subr.mxu0 0.0
    %128 = vmatpush1.msra.mxu0 0.0
    %129 = vmatprep.subr.mxu0 0.0
    %130 = vmatpush1.msra.mxu0 0.0
    %131 = vmatprep.subr.mxu0 0.0
    %132 = vmatpush1.msra.mxu0 0.0
    %133 = vmatprep.subr.mxu0 0.0
    %134 = vmatpush1.msra.mxu0 0.0
    %135 = vmatprep.subr.mxu0 0.0
    %136 = vmatpush1.msra.mxu0 0.0
    %137 = vmatprep.subr.mxu0 0.0
    %138 = vmatpush1.msra.mxu0 0.0
    %139 = vmatprep.subr.mxu0 0.0
    %140 = vmatpush1.msra.mxu0 0.0
    %141 = vmatprep.subr.mxu0 0.0
    %142 = vmatpush1.msra.mxu0 0.0
    %143 = vmatprep.subr.mxu0 0.0
    %144 = vmatpush1.msra.mxu0 0.0
    %145 = vmatprep.subr.mxu0 0.0
    %146 = vmatpush1.msra.mxu0 0.0
    %147 = vmatprep.subr.mxu0 0.0
    %148 = vmatpush1.msra.mxu0 0.0
    %149 = vmatprep.subr.mxu0 0.0
    %150 = vmatpush1.msra.mxu0 %v41
    %151 = vmatprep.subr.mxu0 0.0
    %152 = vmatpush1.msra.mxu0 %v40
    %153 = vmatprep.subr.mxu0 0.0
    %154 = vmatpush1.msra.mxu0 %v39
    %155 = vmatprep.subr.mxu0 0.0
    %156 = vmatpush1.msra.mxu0 %v38
    %157 = vmatprep.subr.mxu0 0.0
    %158 = vmatpush2.msra.mxu0 0.0
    %159 = vmatprep.subr.mxu0 0.0
    %160 = vmatpush2.msra.mxu0 0.0
    %161 = vmatprep.subr.mxu0 0.0
    %162 = vmatpush2.msra.mxu0 0.0
    %163 = vmatprep.subr.mxu0 0.0
    %164 = vmatpush2.msra.mxu0 0.0
    %165 = vmatprep.subr.mxu0 0.0
    %166 = vmatpush2.msra.mxu0 0.0
    %167 = vmatprep.subr.mxu0 0.0
    %168 = vmatpush2.msra.mxu0 0.0
    %169 = vmatprep.subr.mxu0 0.0
    %170 = vmatpush2.msra.mxu0 0.0
    %171 = vmatprep.subr.mxu0 0.0
    %172 = vmatpush2.msra.mxu0 0.0
    %173 = vmatprep.subr.mxu0 0.0
    %174 = vmatpush2.msra.mxu0 0.0
    %175 = vmatprep.subr.mxu0 0.0
    %176 = vmatpush2.msra.mxu0 0.0
    %177 = vmatprep.subr.mxu0 0.0
    %178 = vmatpush2.msra.mxu0 0.0
    %179 = vmatprep.subr.mxu0 0.0
    %180 = vmatpush2.msra.mxu0 0.0
    %181 = vmatprep.subr.mxu0 0.0
    %182 = vmatpush2.msra.mxu0 0.0
    %183 = vmatprep.subr.mxu0 0.0
    %184 = vmatpush2.msra.mxu0 0.0
    %185 = vmatprep.subr.mxu0 0.0
    %186 = vmatpush2.msra.mxu0 0.0
    %187 = vmatprep.subr.mxu0 0.0
    %188 = vmatpush2.msra.mxu0 0.0
    %189 = vmatprep.mubr.f32.mxu0 0.0
    %190 = vmatmul.mubr.f32.gmra.mxu0 %v123
    %v191 = vpop.f32.mrf.mxu0
    %v192 = vadd.f32 0.0, %v191
    %v193 = vpop.f32.mrf.mxu0
    %194 = vdwg.mxu0
    %196 = vrot.lane.b32.xlu0 %v192, 32
    %v197 = vpop.permute.xlu0 %196
    %vm199 = vcmask 517376
    %200 = vst.msk [vmem:[#allocation7] sm:$0x3] %vm199, %v197
    %201 = vrot.lane.b32.xlu0 %v44, 64
    %v202 = vpop.permute.xlu0 %201
    %v203 = vsel %vm45, %v202, 0
    %205 = vmatprep.subr.mxu0 0.0
    %206 = vmatpush1.msra.mxu0 0.0
    %207 = vmatprep.subr.mxu0 0.0
    %208 = vmatpush1.msra.mxu0 0.0
    %209 = vmatprep.subr.mxu0 0.0
    %210 = vmatpush1.msra.mxu0 0.0
    %211 = vmatprep.subr.mxu0 0.0
    %212 = vmatpush1.msra.mxu0 0.0
    %213 = vmatprep.subr.mxu0 0.0
    %214 = vmatpush1.msra.mxu0 0.0
    %215 = vmatprep.subr.mxu0 0.0
    %216 = vmatpush1.msra.mxu0 0.0
    %217 = vmatprep.subr.mxu0 0.0
    %218 = vmatpush1.msra.mxu0 0.0
    %219 = vmatprep.subr.mxu0 0.0
    %220 = vmatpush1.msra.mxu0 0.0
    %221 = vmatprep.subr.mxu0 0.0
    %222 = vmatpush1.msra.mxu0 0.0
    %223 = vmatprep.subr.mxu0 0.0
    %224 = vmatpush1.msra.mxu0 0.0
    %225 = vmatprep.subr.mxu0 0.0
    %226 = vmatpush1.msra.mxu0 0.0
    %227 = vmatprep.subr.mxu0 0.0
    %228 = vmatpush1.msra.mxu0 0.0
    %229 = vmatprep.subr.mxu0 0.0
    %230 = vmatpush1.msra.mxu0 %v41
    %231 = vmatprep.subr.mxu0 0.0
    %232 = vmatpush1.msra.mxu0 %v40
    %233 = vmatprep.subr.mxu0 0.0
    %234 = vmatpush1.msra.mxu0 %v39
    %235 = vmatprep.subr.mxu0 0.0
    %236 = vmatpush1.msra.mxu0 %v38
    %237 = vmatprep.subr.mxu0 0.0
    %238 = vmatpush2.msra.mxu0 0.0
    %239 = vmatprep.subr.mxu0 0.0
    %240 = vmatpush2.msra.mxu0 0.0
    %241 = vmatprep.subr.mxu0 0.0
    %242 = vmatpush2.msra.mxu0 0.0
    %243 = vmatprep.subr.mxu0 0.0
    %244 = vmatpush2.msra.mxu0 0.0
    %245 = vmatprep.subr.mxu0 0.0
    %246 = vmatpush2.msra.mxu0 0.0
    %247 = vmatprep.subr.mxu0 0.0
    %248 = vmatpush2.msra.mxu0 0.0
    %249 = vmatprep.subr.mxu0 0.0
    %250 = vmatpush2.msra.mxu0 0.0
    %251 = vmatprep.subr.mxu0 0.0
    %252 = vmatpush2.msra.mxu0 0.0
    %253 = vmatprep.subr.mxu0 0.0
    %254 = vmatpush2.msra.mxu0 0.0
    %255 = vmatprep.subr.mxu0 0.0
    %256 = vmatpush2.msra.mxu0 0.0
    %257 = vmatprep.subr.mxu0 0.0
    %258 = vmatpush2.msra.mxu0 0.0
    %259 = vmatprep.subr.mxu0 0.0
    %260 = vmatpush2.msra.mxu0 0.0
    %261 = vmatprep.subr.mxu0 0.0
    %262 = vmatpush2.msra.mxu0 0.0
    %263 = vmatprep.subr.mxu0 0.0
    %264 = vmatpush2.msra.mxu0 0.0
    %265 = vmatprep.subr.mxu0 0.0
    %266 = vmatpush2.msra.mxu0 0.0
    %267 = vmatprep.subr.mxu0 0.0
    %268 = vmatpush2.msra.mxu0 0.0
    %269 = vmatprep.mubr.f32.mxu0 0.0
    %270 = vmatmul.mubr.f32.gmra.mxu0 %v203
    %v271 = vpop.f32.mrf.mxu0
    %v272 = vadd.f32 0.0, %v271
    %v273 = vpop.f32.mrf.mxu0
    %274 = vdwg.mxu0
    %276 = vrot.lane.b32.xlu0 %v272, 64
    %v277 = vpop.permute.xlu0 %276
    %vm279 = vcmask 779776
    %280 = vst.msk [vmem:[#allocation7] sm:$0x3] %vm279, %v277
    %281 = vrot.lane.b32.xlu0 %v44, 32
    %v282 = vpop.permute.xlu0 %281
    %v283 = vsel %vm45, %v282, 0
    %285 = vmatprep.subr.mxu0 0.0
    %286 = vmatpush1.msra.mxu0 0.0
    %287 = vmatprep.subr.mxu0 0.0
    %288 = vmatpush1.msra.mxu0 0.0
    %289 = vmatprep.subr.mxu0 0.0
    %290 = vmatpush1.msra.mxu0 0.0
    %291 = vmatprep.subr.mxu0 0.0
    %292 = vmatpush1.msra.mxu0 0.0
    %293 = vmatprep.subr.mxu0 0.0
    %294 = vmatpush1.msra.mxu0 0.0
    %295 = vmatprep.subr.mxu0 0.0
    %296 = vmatpush1.msra.mxu0 0.0
    %297 = vmatprep.subr.mxu0 0.0
    %298 = vmatpush1.msra.mxu0 0.0
    %299 = vmatprep.subr.mxu0 0.0
    %300 = vmatpush1.msra.mxu0 0.0
    %301 = vmatprep.subr.mxu0 0.0
    %302 = vmatpush1.msra.mxu0 0.0
    %303 = vmatprep.subr.mxu0 0.0
    %304 = vmatpush1.msra.mxu0 0.0
    %305 = vmatprep.subr.mxu0 0.0
    %306 = vmatpush1.msra.mxu0 0.0
    %307 = vmatprep.subr.mxu0 0.0
    %308 = vmatpush1.msra.mxu0 0.0
    %309 = vmatprep.subr.mxu0 0.0
    %310 = vmatpush1.msra.mxu0 %v41
    %311 = vmatprep.subr.mxu0 0.0
    %312 = vmatpush1.msra.mxu0 %v40
    %313 = vmatprep.subr.mxu0 0.0
    %314 = vmatpush1.msra.mxu0 %v39
    %315 = vmatprep.subr.mxu0 0.0
    %316 = vmatpush1.msra.mxu0 %v38
    %317 = vmatprep.subr.mxu0 0.0
    %318 = vmatpush2.msra.mxu0 0.0
    %319 = vmatprep.subr.mxu0 0.0
    %320 = vmatpush2.msra.mxu0 0.0
    %321 = vmatprep.subr.mxu0 0.0
    %322 = vmatpush2.msra.mxu0 0.0
    %323 = vmatprep.subr.mxu0 0.0
    %324 = vmatpush2.msra.mxu0 0.0
    %325 = vmatprep.subr.mxu0 0.0
    %326 = vmatpush2.msra.mxu0 0.0
    %327 = vmatprep.subr.mxu0 0.0
    %328 = vmatpush2.msra.mxu0 0.0
    %329 = vmatprep.subr.mxu0 0.0
    %330 = vmatpush2.msra.mxu0 0.0
    %331 = vmatprep.subr.mxu0 0.0
    %332 = vmatpush2.msra.mxu0 0.0
    %333 = vmatprep.subr.mxu0 0.0
    %334 = vmatpush2.msra.mxu0 0.0
    %335 = vmatprep.subr.mxu0 0.0
    %336 = vmatpush2.msra.mxu0 0.0
    %337 = vmatprep.subr.mxu0 0.0
    %338 = vmatpush2.msra.mxu0 0.0
    %339 = vmatprep.subr.mxu0 0.0
    %340 = vmatpush2.msra.mxu0 0.0
    %341 = vmatprep.subr.mxu0 0.0
    %342 = vmatpush2.msra.mxu0 0.0
    %343 = vmatprep.subr.mxu0 0.0
    %344 = vmatpush2.msra.mxu0 0.0
    %345 = vmatprep.subr.mxu0 0.0
    %346 = vmatpush2.msra.mxu0 0.0
    %347 = vmatprep.subr.mxu0 0.0
    %348 = vmatpush2.msra.mxu0 0.0
    %349 = vmatprep.mubr.f32.mxu0 0.0
    %350 = vmatmul.mubr.f32.gmra.mxu0 %v283
    %v351 = vpop.f32.mrf.mxu0
    %v352 = vadd.f32 0.0, %v351
    %v353 = vpop.f32.mrf.mxu0
    %354 = vdwg.mxu0
    %356 = vrot.lane.b32.xlu0 %v352, 96
    %v357 = vpop.permute.xlu0 %356
    %vm359 = vcmask 1042176
    %360 = vst.msk [vmem:[#allocation7] sm:$0x3] %vm359, %v357
    // Predicated region
    $region18: #{tpu_custom_call.1} parent=1 // pred_check
      _
    $region19: #{tpu_custom_call.1} parent=1 // pred_check_branch
      %362 = sbr.rel (0) target = $region21
    $region20: #{tpu_custom_call.1} parent=1 // pred_region
      %s364 = ssub.s32 32, 32
      %365 = vsyncadd [#allocation4], %s364
      %s367 = sshll.u32 [#allocation7], 4
      %s368 = int_to_ptr.vmem [resolvable:$true] %s367
      %370 = dma.vmem_to_hbm [thread:$0]  %s368, 32, %s2, [#allocation4]
    $region21: #{tpu_custom_call.1} parent=1 // pred_fallthru
      _
    // Predicated region
    $region22: #{tpu_custom_call.1} parent=1 // pred_check
      _
    $region23: #{tpu_custom_call.1} parent=1 // pred_check_branch
      %372 = sbr.rel (0) target = $region25
    $region24: #{tpu_custom_call.1} parent=1 // pred_region
      %373 = dma.done [#allocation4], 32
    $region25: #{tpu_custom_call.1} parent=1 // pred_fallthru
      _
    %374 = vsyncpa [#allocation3], 1
    %375 = vsyncpa [#allocation6], 1
    %376 = vsyncpa [#allocation4], 1

</llo_original>
